<compile_context>
chip_gen: v7x
topology: tpu7x:2x2x1
jax: 0.10.0
libtpu: 0.0.40
codegen_flags: <defaults>
</compile_context>

<pallas_src>
import functools

import jax
import jax.numpy as jnp
from jax.experimental import pallas as pl
from jax.experimental.pallas import tpu as pltpu


# ----------------------------------------------------------------------------
# Kernel
# ----------------------------------------------------------------------------
def _f32(x):
    # Skip redundant casts when the storage dtype is already f32.
    return x if x.dtype == jnp.float32 else x.astype(jnp.float32)


def _chunks(n, w):
    """Static (offset, width) column chunks covering [0, n)."""
    out, c0 = [], 0
    while c0 < n:
        out.append((c0, min(w, n - c0)))
        c0 += w
    return out


def normalize_kernel(est_ref, ori_ref, out_ref, *, col_chunk, approx_recip):
    tm, n = out_ref.shape
    row0 = pl.program_id(0) * tm          # global row offset of this tile
    chunks = _chunks(n, col_chunk)

    # ---- Pass 1: rowsum(est * ori) + 1  (identity folded into the sum) ----
    rowsum = jnp.full((tm, 1), 1.0, dtype=jnp.float32)
    for c0, w in chunks:
        prod = _f32(est_ref[:, c0:c0 + w]) * _f32(ori_ref[:, c0:c0 + w])
        rowsum = rowsum + jnp.sum(prod, axis=1, keepdims=True)

    # Safe reciprocal: guard rowsum == 0 so no Inf is ever materialized.
    is_zero = rowsum == 0.0
    safe = jnp.where(is_zero, 1.0, rowsum)
    r_inv = jnp.where(is_zero, 0.0, pl.reciprocal(safe, approx=approx_recip))

    # ---- Pass 2: scale and store per static column chunk ----
    # Inputs are re-read from VMEM refs (cheap) instead of keeping a full
    # (TM, N) product alive.  Only the chunk(s) overlapping this row tile's
    # diagonal build a (TM, w) identity mask.
    for c0, w in chunks:
        prod = _f32(est_ref[:, c0:c0 + w]) * _f32(ori_ref[:, c0:c0 + w])
        has_diag = jnp.logical_and(row0 + tm > c0, row0 < c0 + w)

        @pl.when(jnp.logical_not(has_diag))
        def _plain(prod=prod, c0=c0, w=w):
            out_ref[:, c0:c0 + w] = (r_inv * prod).astype(out_ref.dtype)

        @pl.when(has_diag)
        def _diag(prod=prod, c0=c0, w=w):
            rows = jax.lax.broadcasted_iota(jnp.int32, (tm, w), 0) + row0
            cols = jax.lax.broadcasted_iota(jnp.int32, (tm, w), 1) + c0
            mx = prod + (rows == cols).astype(jnp.float32)   # + I, this chunk only
            out_ref[:, c0:c0 + w] = (r_inv * mx).astype(out_ref.dtype)


# ----------------------------------------------------------------------------
# Wrappers
# ----------------------------------------------------------------------------
def estimate_adj_forward(estimated_adj):
    """forward(): return the parameter as-is (no kernel, no HBM copy)."""
    return estimated_adj


def _vmem_budgets():
    """Generation-aware (vmem_limit_bytes, tile_budget_bytes)."""
    try:
        cap = int(pltpu.get_tpu_info().vmem_capacity_bytes)   # 64 MiB v7x, 128 MiB v5e/v6e
    except Exception:
        cap = 64 * 1024 * 1024                                # conservative fallback
    vmem_limit = (cap * 3) // 4          # 48 MiB on v7x, 96 MiB on v5e/v6e
    tile_budget = (vmem_limit * 4) // 5  # headroom for pipeline machinery
    return vmem_limit, tile_budget


def _pick_block_rows(n_rows, n_cols, *, est_bytes, ori_bytes, out_bytes,
                     col_chunk, budget):
    """Largest row tile whose buffers fit `budget`.

    Per-row bytes = double-buffered streamed tiles at their REAL storage
    itemsize (2 * (est + ori + out) * N) + ~4 chunk-sized f32 temporaries.
    """
    stream_per_row = 2 * (est_bytes + ori_bytes + out_bytes) * n_cols
    temps_per_row = 4 * 4 * min(col_chunk, n_cols)
    per_row = stream_per_row + temps_per_row
    for tm in (1024, 512, 256, 128, 64, 32, 16, 8):
        if tm <= n_rows and tm * per_row <= budget:
            return tm
    return min(n_rows, 8)


def estimate_adj_normalize(estimated_adj, ori_adj, *, block_rows=None,
                           col_chunk=None, approx_reciprocal=True):
    n, m = estimated_adj.shape
    assert n == m, "EstimateAdj.normalize adds eye(n): adjacency must be square"
    assert ori_adj.shape == (n, m), "estimated_adj and ori must match shapes"
    out_dtype = estimated_adj.dtype

    if col_chunk is None:
        col_chunk = m if m <= 1024 else 1024       # multiple of 128 for large m
    col_chunk = int(min(col_chunk, m))

    vmem_limit, tile_budget = _vmem_budgets()

    if block_rows is None:
        block_rows = _pick_block_rows(
            n, m,
            est_bytes=jnp.dtype(estimated_adj.dtype).itemsize,
            ori_bytes=jnp.dtype(ori_adj.dtype).itemsize,
            out_bytes=jnp.dtype(out_dtype).itemsize,
            col_chunk=col_chunk, budget=tile_budget)
        # Keep >= 4 grid steps so v7x megacore sharding and BlockSpec
        # double-buffering actually engage (per-step overhead ~0.35 us is
        # negligible vs losing DMA/compute overlap).
        if n > 8:
            target_steps = 4 if n >= 32 else 2
            cap = max(8, ((pl.cdiv(n, target_steps) + 7) // 8) * 8)
            block_rows = min(block_rows, cap)
    block_rows = int(min(block_rows, n))
    assert block_rows == n or block_rows % 8 == 0, "block_rows must be a multiple of 8"

    grid = (pl.cdiv(n, block_rows),)
    kernel = functools.partial(normalize_kernel, col_chunk=col_chunk,
                               approx_recip=approx_reciprocal)

    # TODO(synk): for graphs so large that even an 8-row full-width block no
    # longer fits VMEM, switch to a 2-pass column-tiled reduction.
    return pl.pallas_call(
        kernel,
        out_shape=jax.ShapeDtypeStruct((n, m), out_dtype),
        grid_spec=pltpu.PrefetchScalarGridSpec(
            num_scalar_prefetch=0,
            grid=grid,
            in_specs=[
                pl.BlockSpec((block_rows, m), lambda i: (i, 0)),
                pl.BlockSpec((block_rows, m), lambda i: (i, 0)),
            ],
            out_specs=pl.BlockSpec((block_rows, m), lambda i: (i, 0)),
        ),
        compiler_params=pltpu.CompilerParams(
            dimension_semantics=("parallel",),
            vmem_limit_bytes=int(vmem_limit),
        ),
    )(estimated_adj, ori_adj)


# ----------------------------------------------------------------------------
# Pure-JAX reference (mirrors the PyTorch semantics)
# ----------------------------------------------------------------------------
def ref_normalize(estimated_adj, ori_adj):
    est = estimated_adj.astype(jnp.float32)
    ori = ori_adj.astype(jnp.float32)
    adj = est * ori
    mx = adj + jnp.eye(adj.shape[0], dtype=jnp.float32)
    rowsum = mx.sum(axis=1)
    inv = 1.0 / rowsum
    r_inv = jnp.where(jnp.isinf(inv), 0.0, inv)
    return jnp.diag(r_inv) @ mx


# ----------------------------------------------------------------------------
# Main
# ----------------------------------------------------------------------------
if __name__ == "__main__":
    key = jax.random.PRNGKey(0)
    key_a, key_b = jax.random.split(key)

    def make_adj(k, n):
        a = (jax.random.uniform(k, (n, n), dtype=jnp.float32) > 0.7).astype(jnp.float32)
        return a * (1.0 - jnp.eye(n, dtype=jnp.float32))

    # ------------------------------------------------------------------ N=256
    N = 256
    ori = make_adj(key_a, N)
    estimated_adj = ori                      # _init_estimation copies adj

    # forward(): identity over the parameter (no copy kernel).
    out_fwd = estimate_adj_forward(estimated_adj)
    jax.block_until_ready(out_fwd)
    assert jnp.array_equal(out_fwd, estimated_adj), "forward mismatch"

    ref32 = ref_normalize(estimated_adj, ori)

    # 1) Default config: auto row tile (grid >= 4 steps), approx EUP reciprocal.
    out = estimate_adj_normalize(estimated_adj, ori)
    jax.block_until_ready(out)
    assert jnp.allclose(out, ref32, atol=1e-2), "normalize (auto/approx) mismatch"

    # 2) Exact reciprocal, explicit multi-tile + multi-chunk config -> tight tol.
    out = estimate_adj_normalize(estimated_adj, ori, block_rows=64, col_chunk=128,
                                 approx_reciprocal=False)
    jax.block_until_ready(out)
    assert jnp.allclose(out, ref32, atol=1e-5), "normalize (exact f32) mismatch"

    # ------------------------------------------------------------------ N=384
    # 3) Diagonal of one row tile straddles two column chunks (192-row tiles,
    #    128-wide chunks) -> exercises the per-chunk diagonal gating.
    N2 = 384
    ori2 = make_adj(key_b, N2)
    est2 = ori2
    out2 = estimate_adj_normalize(est2, ori2, block_rows=192, col_chunk=128,
                                  approx_reciprocal=False)
    jax.block_until_ready(out2)
    assert jnp.allclose(out2, ref_normalize(est2, ori2), atol=1e-5), \
        "normalize (diag straddle) mismatch"

    # 4) bf16 storage (halves HBM traffic); in-kernel math stays f32.
    est_b = estimated_adj.astype(jnp.bfloat16)
    ori_b = ori.astype(jnp.bfloat16)
    out_b = estimate_adj_normalize(est_b, ori_b, block_rows=128, col_chunk=128)
    jax.block_until_ready(out_b)
    assert out_b.dtype == jnp.bfloat16
    assert jnp.allclose(out_b.astype(jnp.float32),
                        ref_normalize(est_b, ori_b), atol=2e-2), "normalize (bf16) mismatch"

    # 5) Mixed dtypes: f32 parameter + bf16 0/1 mask (narrower ori stream).
    out_m = estimate_adj_normalize(estimated_adj, ori.astype(jnp.bfloat16))
    jax.block_until_ready(out_m)
    assert out_m.dtype == jnp.float32
    assert jnp.allclose(out_m, ref32, atol=1e-2), "normalize (mixed dtype) mismatch"

    print("KERNEL_OK")
</pallas_src>

<mosaic_0001>
module attributes {stable_mosaic.version = 11 : i64} {
  func.func @normalize_kernel(%arg0: i32, %arg1: memref<64x256xf32, #tpu.memory_space<vmem>>, %arg2: memref<64x256xf32, #tpu.memory_space<vmem>>, %arg3: memref<64x256xf32, #tpu.memory_space<vmem>>) attributes {dimension_semantics = [#tpu.dimension_semantics<parallel>], iteration_bounds = array<i64: 4>, scalar_prefetch = 0 : i64, scratch_operands = 0 : i64, tpu.core_type = #tpu.core_type<tc>, window_params = [{transform_indices = @transform_0, window_bounds = array<i64: 64, 256>}, {transform_indices = @transform_1, window_bounds = array<i64: 64, 256>}, {transform_indices = @transform_2, window_bounds = array<i64: 64, 256>}]} {
    %c64_i32 = arith.constant 64 : i32
    %0 = arith.muli %arg0, %c64_i32 : i32
    %cst = arith.constant 1.000000e+00 : f32
    %1 = vector.broadcast %cst : f32 to vector<64x1xf32>
    %c0 = arith.constant 0 : index
    %c0_0 = arith.constant 0 : index
    %2 = vector.load %arg1[%c0, %c0_0] : memref<64x256xf32, #tpu.memory_space<vmem>>, vector<64x256xf32>
    %c0_1 = arith.constant 0 : index
    %c0_2 = arith.constant 0 : index
    %3 = vector.load %arg2[%c0_1, %c0_2] : memref<64x256xf32, #tpu.memory_space<vmem>>, vector<64x256xf32>
    %4 = arith.mulf %2, %3 : vector<64x256xf32>
    %cst_3 = arith.constant dense<0.000000e+00> : vector<64xf32>
    %5 = vector.multi_reduction <add>, %4, %cst_3 [1] : vector<64x256xf32> to vector<64xf32>
    %6 = vector.shape_cast %5 : vector<64xf32> to vector<64x1xf32>
    %7 = arith.addf %1, %6 : vector<64x1xf32>
    %cst_4 = arith.constant 0.000000e+00 : f32
    %8 = vector.broadcast %cst_4 : f32 to vector<64x1xf32>
    %9 = arith.cmpf oeq, %7, %8 : vector<64x1xf32>
    %cst_5 = arith.constant 1.000000e+00 : f32
    %10 = vector.broadcast %cst_5 : f32 to vector<64x1xf32>
    %11 = arith.select %9, %10, %7 : vector<64x1xi1>, vector<64x1xf32>
    %12 = tpu.reciprocal %11 {approx = true} : vector<64x1xf32> -> vector<64x1xf32>
    %cst_6 = arith.constant 0.000000e+00 : f32
    %13 = vector.broadcast %cst_6 : f32 to vector<64x1xf32>
    %14 = arith.select %9, %13, %12 : vector<64x1xi1>, vector<64x1xf32>
    %c0_7 = arith.constant 0 : index
    %c0_8 = arith.constant 0 : index
    %15 = vector.load %arg1[%c0_7, %c0_8] : memref<64x256xf32, #tpu.memory_space<vmem>>, vector<64x256xf32>
    %c0_9 = arith.constant 0 : index
    %c0_10 = arith.constant 0 : index
    %16 = vector.load %arg2[%c0_9, %c0_10] : memref<64x256xf32, #tpu.memory_space<vmem>>, vector<64x256xf32>
    %17 = arith.mulf %15, %16 : vector<64x256xf32>
    %c64_i32_11 = arith.constant 64 : i32
    %18 = arith.addi %0, %c64_i32_11 : i32
    %c0_i32 = arith.constant 0 : i32
    %19 = arith.cmpi sgt, %18, %c0_i32 : i32
    %c256_i32 = arith.constant 256 : i32
    %20 = arith.cmpi slt, %0, %c256_i32 : i32
    %21 = arith.andi %19, %20 : i1
    %true = arith.constant true
    %22 = arith.xori %21, %true : i1
    %23 = arith.extui %22 : i1 to i32
    %c0_i32_12 = arith.constant 0 : i32
    %24 = arith.cmpi ne, %23, %c0_i32_12 : i32
    scf.if %24 {
      %27 = vector.broadcast %14 : vector<64x1xf32> to vector<64x256xf32>
      %28 = arith.mulf %27, %17 : vector<64x256xf32>
      %c0_14 = arith.constant 0 : index
      %c0_15 = arith.constant 0 : index
      %29 = vector.load %arg3[%c0_14, %c0_15] : memref<64x256xf32, #tpu.memory_space<vmem>>, vector<64x256xf32>
      tpu.vector_store %arg3[%c0_14, %c0_15], %28 {strides = array<i32>} : memref<64x256xf32, #tpu.memory_space<vmem>>, vector<64x256xf32>,
    } else {
    }
    %25 = arith.extui %21 : i1 to i32
    %c0_i32_13 = arith.constant 0 : i32
    %26 = arith.cmpi ne, %25, %c0_i32_13 : i32
    scf.if %26 {
      %27 = tpu.iota {dimensions = array<i32: 0>} : vector<64x256xi32>
      %28 = vector.broadcast %0 : i32 to vector<64x256xi32>
      %29 = arith.addi %27, %28 : vector<64x256xi32>
      %30 = tpu.iota {dimensions = array<i32: 1>} : vector<64x256xi32>
      %c0_i32_14 = arith.constant 0 : i32
      %31 = vector.broadcast %c0_i32_14 : i32 to vector<64x256xi32>
      %32 = arith.addi %30, %31 : vector<64x256xi32>
      %33 = arith.cmpi eq, %29, %32 : vector<64x256xi32>
      %34 = arith.extui %33 : vector<64x256xi1> to vector<64x256xi32>
      %35 = arith.sitofp %34 : vector<64x256xi32> to vector<64x256xf32>
      %36 = arith.addf %17, %35 : vector<64x256xf32>
      %37 = vector.broadcast %14 : vector<64x1xf32> to vector<64x256xf32>
      %38 = arith.mulf %37, %36 : vector<64x256xf32>
      %c0_15 = arith.constant 0 : index
      %c0_16 = arith.constant 0 : index
      %39 = vector.load %arg3[%c0_15, %c0_16] : memref<64x256xf32, #tpu.memory_space<vmem>>, vector<64x256xf32>
      tpu.vector_store %arg3[%c0_15, %c0_16], %38 {strides = array<i32>} : memref<64x256xf32, #tpu.memory_space<vmem>>, vector<64x256xf32>,
    } else {
    }
    return
  }
  func.func @transform_0(%arg0: i32) -> (i32, i32) {
    %c0_i32 = arith.constant 0 : i32
    %c0_i32_0 = arith.constant 0 : i32
    return %arg0, %c0_i32 : i32, i32
  }
  func.func @transform_1(%arg0: i32) -> (i32, i32) {
    %c0_i32 = arith.constant 0 : i32
    %c0_i32_0 = arith.constant 0 : i32
    return %arg0, %c0_i32 : i32, i32
  }
  func.func @transform_2(%arg0: i32) -> (i32, i32) {
    %c0_i32 = arith.constant 0 : i32
    %c0_i32_0 = arith.constant 0 : i32
    return %arg0, %c0_i32 : i32, i32
  }
}

</mosaic_0001>

<llo_original>
// kernel: tpu_custom_call.1
$region0: #{tpu_custom_call.1}
  #allocation0 [shape = 'u32[]', space=smem, size = 0x4, offset = 0x4, fixed_abs, tag = 'smem constant byte address 0x4 - core index']
  #allocation1 [shape = 'u32[144,128]{1,0:T(1,128)}', space=vmem, size = 0x12000, scoped, tag = 'internal scratch']
  %s0 = inlined_call_operand.hbm [shape: f32[256,256], index: 0, kind: input, shape index: {}]
  %s1 = inlined_call_operand.hbm [shape: f32[256,256], index: 1, kind: input, shape index: {}]
  %s2 = inlined_call_operand.hbm [shape: f32[256,256], index: 2, kind: output, shape index: {}]
  %s3 = sld [smem:[#allocation0]]
  $region57: #{tpu_custom_call.1} parent=0
    _
  %s5 = ssub.s32 1, %s3
  %s6 = scalar_select 0, %s5, %s3
  $region1: #{tpu_custom_call.1} parent=0
    #allocation2 [shape = 'u8[131072]{0}', space=vmem, size = 0x20000, scoped, tag = 'input window, operand 0']
    #allocation3 [shape = 's32[2]{0}', space=sflag, size = 0x8, scoped, tag = 'scoped memory for tpu_custom_call.1']
    #allocation4 [shape = 's32[2]{0}', space=sflag, size = 0x8, scoped, tag = 'scoped memory for tpu_custom_call.1']
    #allocation5 [shape = 'u8[131072]{0}', space=vmem, size = 0x20000, scoped, tag = 'input window, operand 1']
    #allocation6 [shape = 's32[2]{0}', space=sflag, size = 0x8, scoped, tag = 'scoped memory for tpu_custom_call.1']
    #allocation7 [shape = 'u8[131072]{0}', space=vmem, size = 0x20000, scoped, tag = 'output window, operand 0']
    %7 = vsyncpa [#allocation3], 0
    %s8 = scalar_lea.sflag [#allocation3], 1
    %9 = vsyncpa %s8, 0
    %10 = vsyncpa [#allocation6], 0
    %s11 = scalar_lea.sflag [#allocation6], 1
    %12 = vsyncpa %s11, 0
    %13 = vsyncpa [#allocation4], 0
    %s14 = scalar_lea.sflag [#allocation4], 1
    %15 = vsyncpa %s14, 0
    loop: start=0, step=1, limit=6
    $region2: #{tpu_custom_call.1} parent=1 // loop_pre_header
      _
    $region3: #{tpu_custom_call.1} parent=1 // loop_header
      %s17 = sphi 0, %s21
      %p18 = scmp.ge.s32.totalorder %s17, 6
      %s27 = sphi 0, %s29
      %s30 = sphi 0, %s27
      %s31 = sphi 0, %s30
      %s47 = sphi 0, %s31
      %s53 = sphi 0, %s55
      %s56 = sphi 0, %s53
      %s57 = sphi 0, %s56
      %s73 = sphi 0, %s57
      %s79 = sphi 0, %s81
      %s82 = sphi 0, %s79
      %s83 = sphi 0, %s82
      %s99 = sphi 0, %s83
    $region4: #{tpu_custom_call.1} parent=1 // loop_header_branch
      %20 = sbr.rel (%p18) target = $region8
    $region5: #{tpu_custom_call.1} parent=1 // loop_body
      %s22 = ssub.s32 %s17, 1
      %s23 = ssub.s32 %s17, 2
      %s24 = sadd.s32 %s17, 1
      %s25 = ssub.s32 %s17, %s24
      %p26 = scmp.eq.s32.totalorder %s25, 0
      %s28 = sadd.s32 %s27, 1
      %s29 = scalar_select %p26, %s27, %s28
      %p32 = pneg %p26
      %p33 = scmp.eq.s32.totalorder %s17, 3
      %p34 = por %p32, %p33
      %p35 = scmp.ne.s32.totalorder %s27, %s30
      %p36 = scmp.eq.s32.totalorder %s17, 0
      %p37 = por %p35, %p36
      %p38 = scmp.ne.s32.totalorder %s27, %s30
      %p39 = scmp.eq.s32.totalorder %s22, 3
      %p40 = por %p38, %p39
      %p41 = scmp.ne.s32.totalorder %s30, %s31
      %p42 = scmp.eq.s32.totalorder %s22, 0
      %p43 = por %p41, %p42
      %p44 = scmp.ne.s32.totalorder %s30, %s31
      %p45 = scmp.eq.s32.totalorder %s23, 3
      %p46 = por %p44, %p45
      %p48 = scmp.ne.s32.totalorder %s31, %s47
      %p49 = scmp.eq.s32.totalorder %s23, 0
      %p50 = por %p48, %p49
      %s51 = ssub.s32 %s17, %s24
      %p52 = scmp.eq.s32.totalorder %s51, 0
      %s54 = sadd.s32 %s53, 1
      %s55 = scalar_select %p52, %s53, %s54
      %p58 = pneg %p52
      %p59 = scmp.eq.s32.totalorder %s17, 3
      %p60 = por %p58, %p59
      %p61 = scmp.ne.s32.totalorder %s53, %s56
      %p62 = scmp.eq.s32.totalorder %s17, 0
      %p63 = por %p61, %p62
      %p64 = scmp.ne.s32.totalorder %s53, %s56
      %p65 = scmp.eq.s32.totalorder %s22, 3
      %p66 = por %p64, %p65
      %p67 = scmp.ne.s32.totalorder %s56, %s57
      %p68 = scmp.eq.s32.totalorder %s22, 0
      %p69 = por %p67, %p68
      %p70 = scmp.ne.s32.totalorder %s56, %s57
      %p71 = scmp.eq.s32.totalorder %s23, 3
      %p72 = por %p70, %p71
      %p74 = scmp.ne.s32.totalorder %s57, %s73
      %p75 = scmp.eq.s32.totalorder %s23, 0
      %p76 = por %p74, %p75
      %s77 = ssub.s32 %s17, %s24
      %p78 = scmp.eq.s32.totalorder %s77, 0
      %s80 = sadd.s32 %s79, 1
      %s81 = scalar_select %p78, %s79, %s80
      %p84 = pneg %p78
      %p85 = scmp.eq.s32.totalorder %s17, 3
      %p86 = por %p84, %p85
      %p87 = scmp.ne.s32.totalorder %s79, %s82
      %p88 = scmp.eq.s32.totalorder %s17, 0
      %p89 = por %p87, %p88
      %p90 = scmp.ne.s32.totalorder %s79, %s82
      %p91 = scmp.eq.s32.totalorder %s22, 3
      %p92 = por %p90, %p91
      %p93 = scmp.ne.s32.totalorder %s82, %s83
      %p94 = scmp.eq.s32.totalorder %s22, 0
      %p95 = por %p93, %p94
      %p96 = scmp.ne.s32.totalorder %s82, %s83
      %p97 = scmp.eq.s32.totalorder %s23, 3
      %p98 = por %p96, %p97
      %p100 = scmp.ne.s32.totalorder %s83, %s99
      %p101 = scmp.eq.s32.totalorder %s23, 0
      %p102 = por %p100, %p101
      %p103 = scmp.le.s32.totalorder 1, %s17
      %p104 = scmp.lt.s32.totalorder %s17, 5
      %p105 = pnand %p103, %p104
      %p106 = pneg %p105
      // Predicated region
      $region9: #{tpu_custom_call.1} parent=5 // pred_check
        _
      $region10: #{tpu_custom_call.1} parent=5 // pred_check_branch
        %108 = sbr.rel (%p105) target = $region12
      $region11: #{tpu_custom_call.1} parent=5 // pred_region
        %s109 = ssub.s32 %s17, 1
      $region12: #{tpu_custom_call.1} parent=5 // pred_fallthru
        _
      %p110 = scmp.lt.s32.totalorder %s17, 4
      // Predicated region
      $region13: #{tpu_custom_call.1} parent=5 // pred_check
        %p111 = pneg %p110
      $region14: #{tpu_custom_call.1} parent=5 // pred_check_branch
        %113 = sbr.rel (%p111) target = $region16
      $region15: #{tpu_custom_call.1} parent=5 // pred_region
        // Predicated region
        $region17: #{tpu_custom_call.1} parent=15 // pred_check
          %p114 = pneg %p37
        $region18: #{tpu_custom_call.1} parent=15 // pred_check_branch
          %116 = sbr.rel (%p114) target = $region20
        $region19: #{tpu_custom_call.1} parent=15 // pred_region
          %s117 = sand.u32 %s27, 1
          %s118 = scalar_lea.sflag [#allocation3], %s117
          %s119 = sand.u32 %s27, 1
          %s120 = smul.addr %s119, 128
          %s121 = scalar_lea.vmem [#allocation2], %s120
          %s122 = smul.u32 8, %s17
          %s124 = ssub.s32 2048, 2048
          %125 = vsyncadd %s118, %s124
          %s126 = smul.addr %s122, 2
          %s127 = smul.addr %s126, 128
          %s128 = scalar_lea.hbm %s0, %s127
          %s129 = sshll.u32 %s121, 4
          %s130 = int_to_ptr.vmem [resolvable:$true] %s129
          %135 = dma.hbm_to_vmem [thread:$0]  %s128, 2048, %s130, %s118, 256, 256, 16
        $region20: #{tpu_custom_call.1} parent=15 // pred_fallthru
          _
        // Predicated region
        $region21: #{tpu_custom_call.1} parent=15 // pred_check
          %p136 = pneg %p63
        $region22: #{tpu_custom_call.1} parent=15 // pred_check_branch
          %138 = sbr.rel (%p136) target = $region24
        $region23: #{tpu_custom_call.1} parent=15 // pred_region
          %s139 = sand.u32 %s53, 1
          %s140 = scalar_lea.sflag [#allocation6], %s139
          %s141 = sand.u32 %s53, 1
          %s142 = smul.addr %s141, 128
          %s143 = scalar_lea.vmem [#allocation5], %s142
          %s144 = smul.u32 8, %s17
          %s146 = ssub.s32 2048, 2048
          %147 = vsyncadd %s140, %s146
          %s148 = smul.addr %s144, 2
          %s149 = smul.addr %s148, 128
          %s150 = scalar_lea.hbm %s1, %s149
          %s151 = sshll.u32 %s143, 4
          %s152 = int_to_ptr.vmem [resolvable:$true] %s151
          %157 = dma.hbm_to_vmem [thread:$0]  %s150, 2048, %s152, %s140, 256, 256, 16
        $region24: #{tpu_custom_call.1} parent=15 // pred_fallthru
          _
      $region16: #{tpu_custom_call.1} parent=5 // pred_fallthru
        _
      %p158 = scmp.le.s32.totalorder 1, %s17
      %p159 = scmp.lt.s32.totalorder %s17, 5
      %p160 = pnand %p158, %p159
      %p161 = pneg %p160
      // Predicated region
      $region25: #{tpu_custom_call.1} parent=5 // pred_check
        _
      $region26: #{tpu_custom_call.1} parent=5 // pred_check_branch
        %163 = sbr.rel (%p160) target = $region28
      $region27: #{tpu_custom_call.1} parent=5 // pred_region
        %s164 = ssub.s32 %s17, 1
        %s165 = sand.u32 %s30, 1
        %s166 = scalar_lea.sflag [#allocation3], %s165
        %s167 = sand.u32 %s30, 1
        %s168 = smul.addr %s167, 128
        %s169 = scalar_lea.vmem [#allocation2], %s168
        // Predicated region
        $region29: #{tpu_custom_call.1} parent=27 // pred_check
          %p170 = pneg %p43
        $region30: #{tpu_custom_call.1} parent=27 // pred_check_branch
          %172 = sbr.rel (%p170) target = $region32
        $region31: #{tpu_custom_call.1} parent=27 // pred_region
          %173 = dma.done %s166, 2048
        $region32: #{tpu_custom_call.1} parent=27 // pred_fallthru
          _
        %s174 = sand.u32 %s56, 1
        %s175 = scalar_lea.sflag [#allocation6], %s174
        %s176 = sand.u32 %s56, 1
        %s177 = smul.addr %s176, 128
        %s178 = scalar_lea.vmem [#allocation5], %s177
        // Predicated region
        $region33: #{tpu_custom_call.1} parent=27 // pred_check
          %p179 = pneg %p69
        $region34: #{tpu_custom_call.1} parent=27 // pred_check_branch
          %181 = sbr.rel (%p179) target = $region36
        $region35: #{tpu_custom_call.1} parent=27 // pred_region
          %182 = dma.done %s175, 2048
        $region36: #{tpu_custom_call.1} parent=27 // pred_fallthru
          _
        %s183 = sand.u32 %s30, 1
        %s184 = scalar_lea.sflag [#allocation3], %s183
        %s185 = sand.u32 %s30, 1
        %s186 = smul.addr %s185, 128
        %s187 = scalar_lea.vmem [#allocation2], %s186
        %p188 = pneg %p43
        %p189 = pneg %p40
        %s190 = sand.u32 %s56, 1
        %s191 = scalar_lea.sflag [#allocation6], %s190
        %s192 = sand.u32 %s56, 1
        %s193 = smul.addr %s192, 128
        %s194 = scalar_lea.vmem [#allocation5], %s193
        %p195 = pneg %p69
        %p196 = pneg %p66
        %p197 = pneg %p95
        %p198 = pneg %p92
        %s199 = sand.u32 %s82, 1
        %s200 = scalar_lea.sflag [#allocation4], %s199
        %s201 = sand.u32 %s82, 1
        %s202 = smul.addr %s201, 128
        %s203 = scalar_lea.vmem [#allocation7], %s202
        %s204 = smul.u32 8, %s22
        %s205 = smul.u32 8, %s22
        %s206 = smul.u32 8, %s22
        %s207 = smul.u32 %s22, 64
        %v208 = vld [vmem:[%s169] sm:$0xff]
        %v209 = vld [vmem:[%s169 + $0x8] sm:$0xff]
        %v210 = vld [vmem:[%s169 + $0x10] sm:$0xff]
        %v211 = vld [vmem:[%s169 + $0x18] sm:$0xff]
        %v212 = vld [vmem:[%s169 + $0x20] sm:$0xff]
        %v213 = vld [vmem:[%s169 + $0x28] sm:$0xff]
        %v214 = vld [vmem:[%s169 + $0x30] sm:$0xff]
        %v215 = vld [vmem:[%s169 + $0x38] sm:$0xff]
        %v216 = vld [vmem:[%s169 + $0x40] sm:$0xff]
        %v217 = vld [vmem:[%s169 + $0x48] sm:$0xff]
        %v218 = vld [vmem:[%s169 + $0x50] sm:$0xff]
        %v219 = vld [vmem:[%s169 + $0x58] sm:$0xff]
        %v220 = vld [vmem:[%s169 + $0x60] sm:$0xff]
        %v221 = vld [vmem:[%s169 + $0x68] sm:$0xff]
        %v222 = vld [vmem:[%s169 + $0x70] sm:$0xff]
        %v223 = vld [vmem:[%s169 + $0x78] sm:$0xff]
        %v224 = vld [vmem:[%s178] sm:$0xff]
        %v225 = vld [vmem:[%s178 + $0x8] sm:$0xff]
        %v226 = vld [vmem:[%s178 + $0x10] sm:$0xff]
        %v227 = vld [vmem:[%s178 + $0x18] sm:$0xff]
        %v228 = vld [vmem:[%s178 + $0x20] sm:$0xff]
        %v229 = vld [vmem:[%s178 + $0x28] sm:$0xff]
        %v230 = vld [vmem:[%s178 + $0x30] sm:$0xff]
        %v231 = vld [vmem:[%s178 + $0x38] sm:$0xff]
        %v232 = vld [vmem:[%s178 + $0x40] sm:$0xff]
        %v233 = vld [vmem:[%s178 + $0x48] sm:$0xff]
        %v234 = vld [vmem:[%s178 + $0x50] sm:$0xff]
        %v235 = vld [vmem:[%s178 + $0x58] sm:$0xff]
        %v236 = vld [vmem:[%s178 + $0x60] sm:$0xff]
        %v237 = vld [vmem:[%s178 + $0x68] sm:$0xff]
        %v238 = vld [vmem:[%s178 + $0x70] sm:$0xff]
        %v239 = vld [vmem:[%s178 + $0x78] sm:$0xff]
        %v240 = vmul.f32 %v208, %v224
        %v241 = vmul.f32 %v209, %v225
        %v242 = vmul.f32 %v210, %v226
        %v243 = vmul.f32 %v211, %v227
        %v244 = vmul.f32 %v212, %v228
        %v245 = vmul.f32 %v213, %v229
        %v246 = vmul.f32 %v214, %v230
        %v247 = vmul.f32 %v215, %v231
        %v248 = vmul.f32 %v216, %v232
        %v249 = vmul.f32 %v217, %v233
        %v250 = vmul.f32 %v218, %v234
        %v251 = vmul.f32 %v219, %v235
        %v252 = vmul.f32 %v220, %v236
        %v253 = vmul.f32 %v221, %v237
        %v254 = vmul.f32 %v222, %v238
        %v255 = vmul.f32 %v223, %v239
        %v256 = vadd.f32 %v240, %v241
        %257 = vadd.xlane.f32.xlu0 %v256
        %v258 = vpop.xlane.xlu0 %257
        %v259 = vadd.f32 %v242, %v243
        %260 = vadd.xlane.f32.xlu0 %v259
        %v261 = vpop.xlane.xlu0 %260
        %v262 = vadd.f32 %v244, %v245
        %263 = vadd.xlane.f32.xlu0 %v262
        %v264 = vpop.xlane.xlu0 %263
        %v265 = vadd.f32 %v246, %v247
        %266 = vadd.xlane.f32.xlu0 %v265
        %v267 = vpop.xlane.xlu0 %266
        %v268 = vadd.f32 %v248, %v249
        %269 = vadd.xlane.f32.xlu0 %v268
        %v270 = vpop.xlane.xlu0 %269
        %v271 = vadd.f32 %v250, %v251
        %272 = vadd.xlane.f32.xlu0 %v271
        %v273 = vpop.xlane.xlu0 %272
        %v274 = vadd.f32 %v252, %v253
        %275 = vadd.xlane.f32.xlu0 %v274
        %v276 = vpop.xlane.xlu0 %275
        %v277 = vadd.f32 %v254, %v255
        %278 = vadd.xlane.f32.xlu0 %v277
        %v279 = vpop.xlane.xlu0 %278
        %v280 = vadd.f32 %v258, 1.0
        %v281 = vadd.f32 %v261, 1.0
        %v282 = vadd.f32 %v264, 1.0
        %v283 = vadd.f32 %v267, 1.0
        %v284 = vadd.f32 %v270, 1.0
        %v285 = vadd.f32 %v273, 1.0
        %v286 = vadd.f32 %v276, 1.0
        %v287 = vadd.f32 %v279, 1.0
        %vm288 = vcmp.eq.f32.partialorder %v280, 0.0
        %vm289 = vcmp.eq.f32.partialorder %v281, 0.0
        %vm290 = vcmp.eq.f32.partialorder %v282, 0.0
        %vm291 = vcmp.eq.f32.partialorder %v283, 0.0
        %vm292 = vcmp.eq.f32.partialorder %v284, 0.0
        %vm293 = vcmp.eq.f32.partialorder %v285, 0.0
        %vm294 = vcmp.eq.f32.partialorder %v286, 0.0
        %vm295 = vcmp.eq.f32.partialorder %v287, 0.0
        %v296 = vsel %vm288, 1.0, %v280
        %v297 = vsel %vm289, 1.0, %v281
        %v298 = vsel %vm290, 1.0, %v282
        %v299 = vsel %vm291, 1.0, %v283
        %v300 = vsel %vm292, 1.0, %v284
        %v301 = vsel %vm293, 1.0, %v285
        %v302 = vsel %vm294, 1.0, %v286
        %v303 = vsel %vm295, 1.0, %v287
        %v304 = vrcp.pop %v296
        %v305 = vrcp.pop %v297
        %v306 = vrcp.pop %v298
        %v307 = vrcp.pop %v299
        %v308 = vrcp.pop %v300
        %v309 = vrcp.pop %v301
        %v310 = vrcp.pop %v302
        %v311 = vrcp.pop %v303
        %v312 = vsel %vm288, 0.0, %v304
        %v313 = vsel %vm289, 0.0, %v305
        %v314 = vsel %vm290, 0.0, %v306
        %v315 = vsel %vm291, 0.0, %v307
        %v316 = vsel %vm292, 0.0, %v308
        %v317 = vsel %vm293, 0.0, %v309
        %v318 = vsel %vm294, 0.0, %v310
        %v319 = vsel %vm295, 0.0, %v311
        %s320 = sadd.s32 %s207, 64
        %p321 = scmp.gt.s32.totalorder %s320, 0
        %p322 = scmp.lt.s32.totalorder %s207, 256
        %p323 = pnand %p321, %p322
        %p324 = pneg %p323
        // Predicated region
        $region37: #{tpu_custom_call.1} parent=27 // pred_check
          _
        $region38: #{tpu_custom_call.1} parent=27 // pred_check_branch
          %326 = sbr.rel (%p323) target = $region40
        $region39: #{tpu_custom_call.1} parent=27 // pred_region
          %v327 = vlaneseq
          %v328 = vshrl.u32 %v327, 7
          %v329 = vadd.s32 %v328, 8
          %v330 = vadd.s32 %v328, 16
          %v331 = vadd.s32 %v328, 24
          %v332 = vadd.s32 %v328, 32
          %v333 = vadd.s32 %v328, 40
          %v334 = vadd.s32 %v328, 48
          %v335 = vadd.s32 %v328, 56
          %v336 = vstv %s207
          %v337 = vadd.s32 %v328, %v336
          %v338 = vadd.s32 %v329, %v336
          %v339 = vadd.s32 %v330, %v336
          %v340 = vadd.s32 %v331, %v336
          %v341 = vadd.s32 %v332, %v336
          %v342 = vadd.s32 %v333, %v336
          %v343 = vadd.s32 %v334, %v336
          %v344 = vadd.s32 %v335, %v336
          %v345 = vlaneseq
          %v346 = vand.u32 %v345, 127
          %v347 = vadd.s32 %v346, 128
          %vm348 = vcmp.eq.s32.totalorder %v337, %v346
          %vm349 = vcmp.eq.s32.totalorder %v337, %v347
          %vm350 = vcmp.eq.s32.totalorder %v338, %v346
          %vm351 = vcmp.eq.s32.totalorder %v338, %v347
          %vm352 = vcmp.eq.s32.totalorder %v339, %v346
          %vm353 = vcmp.eq.s32.totalorder %v339, %v347
          %vm354 = vcmp.eq.s32.totalorder %v340, %v346
          %vm355 = vcmp.eq.s32.totalorder %v340, %v347
          %vm356 = vcmp.eq.s32.totalorder %v341, %v346
          %vm357 = vcmp.eq.s32.totalorder %v341, %v347
          %vm358 = vcmp.eq.s32.totalorder %v342, %v346
          %vm359 = vcmp.eq.s32.totalorder %v342, %v347
          %vm360 = vcmp.eq.s32.totalorder %v343, %v346
          %vm361 = vcmp.eq.s32.totalorder %v343, %v347
          %vm362 = vcmp.eq.s32.totalorder %v344, %v346
          %vm363 = vcmp.eq.s32.totalorder %v344, %v347
          %v364 = vsel %vm348, 1, 0
          %v365 = vsel %vm349, 1, 0
          %v366 = vsel %vm350, 1, 0
          %v367 = vsel %vm351, 1, 0
          %v368 = vsel %vm352, 1, 0
          %v369 = vsel %vm353, 1, 0
          %v370 = vsel %vm354, 1, 0
          %v371 = vsel %vm355, 1, 0
          %v372 = vsel %vm356, 1, 0
          %v373 = vsel %vm357, 1, 0
          %v374 = vsel %vm358, 1, 0
          %v375 = vsel %vm359, 1, 0
          %v376 = vsel %vm360, 1, 0
          %v377 = vsel %vm361, 1, 0
          %v378 = vsel %vm362, 1, 0
          %v379 = vsel %vm363, 1, 0
          %v380 = vcvt.s32.f32 %v364
          %v381 = vcvt.s32.f32 %v365
          %v382 = vcvt.s32.f32 %v366
          %v383 = vcvt.s32.f32 %v367
          %v384 = vcvt.s32.f32 %v368
          %v385 = vcvt.s32.f32 %v369
          %v386 = vcvt.s32.f32 %v370
          %v387 = vcvt.s32.f32 %v371
          %v388 = vcvt.s32.f32 %v372
          %v389 = vcvt.s32.f32 %v373
          %v390 = vcvt.s32.f32 %v374
          %v391 = vcvt.s32.f32 %v375
          %v392 = vcvt.s32.f32 %v376
          %v393 = vcvt.s32.f32 %v377
          %v394 = vcvt.s32.f32 %v378
          %v395 = vcvt.s32.f32 %v379
          %v396 = vadd.f32 %v240, %v380
          %v397 = vadd.f32 %v241, %v381
          %v398 = vadd.f32 %v242, %v382
          %v399 = vadd.f32 %v243, %v383
          %v400 = vadd.f32 %v244, %v384
          %v401 = vadd.f32 %v245, %v385
          %v402 = vadd.f32 %v246, %v386
          %v403 = vadd.f32 %v247, %v387
          %v404 = vadd.f32 %v248, %v388
          %v405 = vadd.f32 %v249, %v389
          %v406 = vadd.f32 %v250, %v390
          %v407 = vadd.f32 %v251, %v391
          %v408 = vadd.f32 %v252, %v392
          %v409 = vadd.f32 %v253, %v393
          %v410 = vadd.f32 %v254, %v394
          %v411 = vadd.f32 %v255, %v395
          %v412 = vmul.f32 %v312, %v396
          %v413 = vmul.f32 %v312, %v397
          %v414 = vmul.f32 %v313, %v398
          %v415 = vmul.f32 %v313, %v399
          %v416 = vmul.f32 %v314, %v400
          %v417 = vmul.f32 %v314, %v401
          %v418 = vmul.f32 %v315, %v402
          %v419 = vmul.f32 %v315, %v403
          %v420 = vmul.f32 %v316, %v404
          %v421 = vmul.f32 %v316, %v405
          %v422 = vmul.f32 %v317, %v406
          %v423 = vmul.f32 %v317, %v407
          %v424 = vmul.f32 %v318, %v408
          %v425 = vmul.f32 %v318, %v409
          %v426 = vmul.f32 %v319, %v410
          %v427 = vmul.f32 %v319, %v411
          %428 = vst [vmem:[%s203] sm:$0xff] %v412
          %429 = vst [vmem:[%s203 + $0x8] sm:$0xff] %v413
          %430 = vst [vmem:[%s203 + $0x10] sm:$0xff] %v414
          %431 = vst [vmem:[%s203 + $0x18] sm:$0xff] %v415
          %432 = vst [vmem:[%s203 + $0x20] sm:$0xff] %v416
          %433 = vst [vmem:[%s203 + $0x28] sm:$0xff] %v417
          %434 = vst [vmem:[%s203 + $0x30] sm:$0xff] %v418
          %435 = vst [vmem:[%s203 + $0x38] sm:$0xff] %v419
          %436 = vst [vmem:[%s203 + $0x40] sm:$0xff] %v420
          %437 = vst [vmem:[%s203 + $0x48] sm:$0xff] %v421
          %438 = vst [vmem:[%s203 + $0x50] sm:$0xff] %v422
          %439 = vst [vmem:[%s203 + $0x58] sm:$0xff] %v423
          %440 = vst [vmem:[%s203 + $0x60] sm:$0xff] %v424
          %441 = vst [vmem:[%s203 + $0x68] sm:$0xff] %v425
          %442 = vst [vmem:[%s203 + $0x70] sm:$0xff] %v426
          %443 = vst [vmem:[%s203 + $0x78] sm:$0xff] %v427
        $region40: #{tpu_custom_call.1} parent=27 // pred_fallthru
          _
        // Predicated region
        $region41: #{tpu_custom_call.1} parent=27 // pred_check
          %p444 = pneg %p323
        $region42: #{tpu_custom_call.1} parent=27 // pred_check_branch
          %446 = sbr.rel (%p444) target = $region44
        $region43: #{tpu_custom_call.1} parent=27 // pred_region
          %v447 = vmul.f32 %v312, %v240
          %v448 = vmul.f32 %v312, %v241
          %v449 = vmul.f32 %v313, %v242
          %v450 = vmul.f32 %v313, %v243
          %v451 = vmul.f32 %v314, %v244
          %v452 = vmul.f32 %v314, %v245
          %v453 = vmul.f32 %v315, %v246
          %v454 = vmul.f32 %v315, %v247
          %v455 = vmul.f32 %v316, %v248
          %v456 = vmul.f32 %v316, %v249
          %v457 = vmul.f32 %v317, %v250
          %v458 = vmul.f32 %v317, %v251
          %v459 = vmul.f32 %v318, %v252
          %v460 = vmul.f32 %v318, %v253
          %v461 = vmul.f32 %v319, %v254
          %v462 = vmul.f32 %v319, %v255
          %463 = vst [vmem:[%s203] sm:$0xff] %v447
          %464 = vst [vmem:[%s203 + $0x8] sm:$0xff] %v448
          %465 = vst [vmem:[%s203 + $0x10] sm:$0xff] %v449
          %466 = vst [vmem:[%s203 + $0x18] sm:$0xff] %v450
          %467 = vst [vmem:[%s203 + $0x20] sm:$0xff] %v451
          %468 = vst [vmem:[%s203 + $0x28] sm:$0xff] %v452
          %469 = vst [vmem:[%s203 + $0x30] sm:$0xff] %v453
          %470 = vst [vmem:[%s203 + $0x38] sm:$0xff] %v454
          %471 = vst [vmem:[%s203 + $0x40] sm:$0xff] %v455
          %472 = vst [vmem:[%s203 + $0x48] sm:$0xff] %v456
          %473 = vst [vmem:[%s203 + $0x50] sm:$0xff] %v457
          %474 = vst [vmem:[%s203 + $0x58] sm:$0xff] %v458
          %475 = vst [vmem:[%s203 + $0x60] sm:$0xff] %v459
          %476 = vst [vmem:[%s203 + $0x68] sm:$0xff] %v460
          %477 = vst [vmem:[%s203 + $0x70] sm:$0xff] %v461
          %478 = vst [vmem:[%s203 + $0x78] sm:$0xff] %v462
        $region44: #{tpu_custom_call.1} parent=27 // pred_fallthru
          _
        %s479 = sand.u32 %s82, 1
        %s480 = scalar_lea.sflag [#allocation4], %s479
        %s481 = sand.u32 %s82, 1
        %s482 = smul.addr %s481, 128
        %s483 = scalar_lea.vmem [#allocation7], %s482
        // Predicated region
        $region45: #{tpu_custom_call.1} parent=27 // pred_check
          %p484 = pneg %p92
        $region46: #{tpu_custom_call.1} parent=27 // pred_check_branch
          %486 = sbr.rel (%p484) target = $region48
        $region47: #{tpu_custom_call.1} parent=27 // pred_region
          %s487 = smul.u32 8, %s22
          %s489 = ssub.s32 2048, 2048
          %490 = vsyncadd %s480, %s489
          %s491 = smul.addr %s487, 2
          %s492 = smul.addr %s491, 128
          %s493 = scalar_lea.hbm %s2, %s492
          %s494 = sshll.u32 %s483, 4
          %s495 = int_to_ptr.vmem [resolvable:$true] %s494
          %500 = dma.vmem_to_hbm [thread:$0]  %s495, 2048, %s493, %s480, 256, 256, 16
        $region48: #{tpu_custom_call.1} parent=27 // pred_fallthru
          _
      $region28: #{tpu_custom_call.1} parent=5 // pred_fallthru
        _
      %p501 = scmp.le.s32.totalorder 2, %s17
      // Predicated region
      $region49: #{tpu_custom_call.1} parent=5 // pred_check
        %p502 = pneg %p501
      $region50: #{tpu_custom_call.1} parent=5 // pred_check_branch
        %504 = sbr.rel (%p502) target = $region52
      $region51: #{tpu_custom_call.1} parent=5 // pred_region
        %s505 = ssub.s32 %s17, 2
        // Predicated region
        $region53: #{tpu_custom_call.1} parent=51 // pred_check
          %p506 = pneg %p98
        $region54: #{tpu_custom_call.1} parent=51 // pred_check_branch
          %508 = sbr.rel (%p506) target = $region56
        $region55: #{tpu_custom_call.1} parent=51 // pred_region
          %s509 = sand.u32 %s83, 1
          %s510 = scalar_lea.sflag [#allocation4], %s509
          %s511 = sand.u32 %s83, 1
          %s512 = smul.addr %s511, 128
          %s513 = scalar_lea.vmem [#allocation7], %s512
          %514 = dma.done %s510, 2048
        $region56: #{tpu_custom_call.1} parent=51 // pred_fallthru
          _
      $region52: #{tpu_custom_call.1} parent=5 // pred_fallthru
        _
    $region6: #{tpu_custom_call.1} parent=1 // loop_footer
      %s21 = sadd.s32 1, %s17
    $region7: #{tpu_custom_call.1} parent=1 // loop_footer_branch
      %16 = sbr.rel target = $region3
    $region8: #{tpu_custom_call.1} parent=1 // loop_exit
      _
    %515 = vsyncpa [#allocation3], 1
    %s516 = scalar_lea.sflag [#allocation3], 1
    %517 = vsyncpa %s516, 1
    %518 = vsyncpa [#allocation6], 1
    %s519 = scalar_lea.sflag [#allocation6], 1
    %520 = vsyncpa %s519, 1
    %521 = vsyncpa [#allocation4], 1
    %s522 = scalar_lea.sflag [#allocation4], 1
    %523 = vsyncpa %s522, 1

</llo_original>
